<compile_context>
chip_gen: v6e
topology: v6e:2x2x1
jax: 0.10.0
libtpu: 0.0.40
codegen_flags: <defaults>
</compile_context>

<pallas_src>
import functools

import jax
import jax.numpy as jnp
from jax.experimental import pallas as pl
from jax.experimental.pallas import tpu as pltpu

_MIB = 1024 * 1024


# ----------------------------------------------------------------------------- kernels
def _fused_kernel(x_ref, w0_ref, w1_ref, b_ref, o_ref, *, cdt):
    """GEMM + in-VMEM (kh, kw) interleave.

    x_ref : (R*W, Cin)         R whole image rows of activations
    w?_ref: (Cin, 2*Cout)      weight for kh = 0 / 1, columns ordered (kw, co)
    b_ref : (1, 2*Cout)        f32 bias, columns ordered (kw, co)
    o_ref : (R, 2, W, 2*Cout)  output block; axis 1 is kh
    """
    R, _, W, CG = o_ref.shape
    x = x_ref[...]
    if cdt is not None:
        x = x.astype(cdt)                    # in-kernel cast: x stays in its HBM dtype
    b = b_ref[...]
    acc0 = jnp.dot(x, w0_ref[...], preferred_element_type=jnp.float32) + b
    acc1 = jnp.dot(x, w1_ref[...], preferred_element_type=jnp.float32) + b
    o_ref[:, 0, :, :] = acc0.reshape(R, W, CG).astype(o_ref.dtype)
    o_ref[:, 1, :, :] = acc1.reshape(R, W, CG).astype(o_ref.dtype)


def _gemm_kernel(x_ref, w_ref, b_ref, o_ref, *, cdt):
    """Plain tiled GEMM tile (fallback path): o = x @ w + b."""
    x = x_ref[...]
    if cdt is not None:
        x = x.astype(cdt)
    acc = jnp.dot(x, w_ref[...], preferred_element_type=jnp.float32)
    o_ref[...] = (acc + b_ref[...]).astype(o_ref.dtype)


# ----------------------------------------------------------------------------- planning
def _vmem_plan():
    """(pipeline-buffer budget, vmem_limit_bytes, big_vmem) safe on v5e/v6e/v7x."""
    budget, limit, big = 30 * _MIB, 48 * _MIB, False      # v7x: 64 MiB/TC, keep headroom
    try:
        cap = pltpu.get_tpu_info().vmem_capacity_bytes
        if cap >= 100 * _MIB:                             # v5e / v6e: 128 MiB per core
            budget, limit, big = 64 * _MIB, 96 * _MIB, True
    except Exception:
        pass
    return budget, limit, big


def _divisors(n):
    ds = set()
    i = 1
    while i * i <= n:
        if n % i == 0:
            ds.add(i)
            ds.add(n // i)
        i += 1
    return sorted(ds)


def _plan_fused_rows(BH, W, Cin_p, CG, xb, wb, ob, tm_target, budget):
    """Pick R (image rows per block) for the fused path, or None if infeasible."""
    def fits(tm):
        need = (2 * tm * Cin_p * xb          # x block, double-buffered
                + 2 * 2 * Cin_p * CG * wb    # w0 + w1 (constant block index, counted 2x)
                + 2 * CG * 4                 # bias
                + 2 * tm * 2 * CG * ob       # out block, double-buffered
                + 2 * tm * CG * 4)           # f32 accumulators
        return need <= budget

    cands = []
    for R in _divisors(BH):
        tm = R * W
        if (tm % 8) and (R != BH):           # x block sublane alignment
            continue
        if not fits(tm):
            continue
        cands.append(R)
    if not cands:
        return None
    multi = [R for R in cands if BH // R >= 2]   # keep >= 2 grid steps (v7x megacore)
    pool = multi if multi else cands
    under = [R for R in pool if R * W <= tm_target]
    return max(under) if under else min(pool)


def _choose_row_tile(n, target):
    """Row tile <= target (multiple of 8). Prefer one dividing n exactly (no pad)."""
    t = target
    while t >= 128:
        if n % t == 0:
            return t, n
        t //= 2
    if n <= target:
        t = -(-n // 8) * 8
        return t, t
    return target, -(-n // target) * target


def _choose_col_tile(k_pad, target):
    """Largest multiple of 128 <= target that divides k_pad (k_pad % 128 == 0)."""
    t = max(128, min(target, k_pad))
    t -= t % 128
    while t > 128:
        if k_pad % t == 0:
            return t
        t -= 128
    return 128


# ----------------------------------------------------------------------------- pallas calls
def _fused_call(x_flat, w0, w1, b_g, *, B, H, W, R, out_dtype, compute_dtype, vmem_limit):
    BH = B * H
    Cin_p = x_flat.shape[1]
    CG = w0.shape[1]                                  # 2 * Cout
    kernel = functools.partial(_fused_kernel, cdt=compute_dtype)
    y = pl.pallas_call(
        kernel,
        out_shape=jax.ShapeDtypeStruct((BH, 2, W, CG), out_dtype),
        grid_spec=pltpu.PrefetchScalarGridSpec(
            num_scalar_prefetch=0,
            grid=(BH // R,),
            in_specs=[
                pl.BlockSpec((R * W, Cin_p), lambda i: (i, 0)),
                pl.BlockSpec((Cin_p, CG), lambda i: (0, 0)),   # constant -> DMA'd once
                pl.BlockSpec((Cin_p, CG), lambda i: (0, 0)),
                pl.BlockSpec((1, CG), lambda i: (0, 0)),
            ],
            out_specs=pl.BlockSpec((R, 2, W, CG), lambda i: (i, 0, 0, 0)),
        ),
        compiler_params=pltpu.CompilerParams(
            dimension_semantics=("parallel",),
            vmem_limit_bytes=vmem_limit,
        ),
    )(x_flat, w0, w1, b_g)
    # (BH, 2, W, 2*Cout) row-major == (B, 2H, 2W, Cout) row-major: metadata-only reshape.
    return y.reshape(B, 2 * H, 2 * W, CG // 2)


def _fallback_gemm(x_flat, w_cols, b_cols, *, tm_target, tn_target, out_dtype,
                   compute_dtype, budget, vmem_limit):
    """y[n, k] = x_flat[n, :] @ w_cols[:, k] + b_cols[0, k]  (K possibly tiled)."""
    N, Cin_p = x_flat.shape
    K = w_cols.shape[1]

    K_pad = pl.cdiv(K, 128) * 128                    # lane-dense stores
    if K_pad != K:
        w_cols = jnp.pad(w_cols, ((0, 0), (0, K_pad - K)))
        b_cols = jnp.pad(b_cols, ((0, 0), (0, K_pad - K)))

    xb = x_flat.dtype.itemsize
    wb = w_cols.dtype.itemsize
    ob = jnp.dtype(out_dtype).itemsize

    def fits(tm, tn):
        need = 2 * (tm * Cin_p * xb + Cin_p * tn * wb + tn * 4 + tm * tn * ob) + tm * tn * 4
        return need <= budget

    tm = max(128, tm_target - tm_target % 128)
    if fits(tm, K_pad):
        tn = K_pad                                    # whole weight block-resident
    else:
        tn = _choose_col_tile(K_pad, tn_target)
        while tm > 128 and not fits(tm, tn):
            tm //= 2

    tm, N_pad = _choose_row_tile(N, tm)
    if N_pad // tm == 1 and tm >= 256 and N > 128:    # keep >= 2 row steps (v7x megacore)
        tm //= 2
    if N_pad != N:
        x_flat = jnp.pad(x_flat, ((0, N_pad - N), (0, 0)))

    n_rows, n_cols = N_pad // tm, K_pad // tn
    kernel = functools.partial(_gemm_kernel, cdt=compute_dtype)

    # Redundant HBM traffic if we re-stream one operand along the inner grid axis.
    rows_outer_extra = (n_rows - 1) * Cin_p * K_pad * wb     # weight re-streamed
    cols_outer_extra = (n_cols - 1) * N_pad * Cin_p * xb     # activations re-streamed

    if n_cols == 1:
        grid = (n_rows,)
        in_specs = [pl.BlockSpec((tm, Cin_p), lambda i: (i, 0)),
                    pl.BlockSpec((Cin_p, tn), lambda i: (0, 0)),
                    pl.BlockSpec((1, tn), lambda i: (0, 0))]
        out_specs = pl.BlockSpec((tm, tn), lambda i: (i, 0))
        sem = ("parallel",)
    elif rows_outer_extra <= cols_outer_extra:
        grid = (n_rows, n_cols)
        in_specs = [pl.BlockSpec((tm, Cin_p), lambda i, j: (i, 0)),
                    pl.BlockSpec((Cin_p, tn), lambda i, j: (0, j)),
                    pl.BlockSpec((1, tn), lambda i, j: (0, j))]
        out_specs = pl.BlockSpec((tm, tn), lambda i, j: (i, j))
        sem = ("parallel", "parallel")
    else:
        grid = (n_cols, n_rows)
        in_specs = [pl.BlockSpec((tm, Cin_p), lambda j, i: (i, 0)),
                    pl.BlockSpec((Cin_p, tn), lambda j, i: (0, j)),
                    pl.BlockSpec((1, tn), lambda j, i: (0, j))]
        out_specs = pl.BlockSpec((tm, tn), lambda j, i: (i, j))
        sem = ("parallel", "parallel")

    y = pl.pallas_call(
        kernel,
        out_shape=jax.ShapeDtypeStruct((N_pad, K_pad), out_dtype),
        grid_spec=pltpu.PrefetchScalarGridSpec(
            num_scalar_prefetch=0, grid=grid, in_specs=in_specs, out_specs=out_specs),
        compiler_params=pltpu.CompilerParams(
            dimension_semantics=sem, vmem_limit_bytes=vmem_limit),
    )(x_flat, w_cols, b_cols)
    return y[:N, :K]


# ----------------------------------------------------------------------------- core / wrappers
def _up_conv_core(x_flat, weight, bias, B, H, W, *, tm_target, tn_target,
                  compute_dtype, force_fallback):
    """x_flat: (B*H*W, Cin) pixel-major.  Returns (B, 2H, 2W, Cout) channels-last."""
    _, Cin = x_flat.shape
    _, Cout, kH, kW = weight.shape
    out_dtype = x_flat.dtype

    budget, vmem_limit, big_vmem = _vmem_plan()
    if tm_target is None:
        tm_target = 1024 if big_vmem else 512

    # Pad Cin to a lane multiple only when the relative overhead is small (<= 12.5%).
    pad_c = (-Cin) % 128
    if pad_c and pad_c * 8 <= Cin:
        x_flat = jnp.pad(x_flat, ((0, 0), (0, pad_c)))
        weight = jnp.pad(weight, ((0, pad_c), (0, 0), (0, 0), (0, 0)))
    Cin_p = x_flat.shape[1]

    wdt = compute_dtype if compute_dtype is not None else weight.dtype
    w_cd = weight.astype(wdt)          # tiny one-time cast; bf16 halves weight HBM/VMEM
    bias_f32 = bias.astype(jnp.float32)

    xb = x_flat.dtype.itemsize
    wb = jnp.dtype(wdt).itemsize
    ob = jnp.dtype(out_dtype).itemsize

    BH = B * H
    CG = kW * Cout

    R = None
    if not force_fallback and W % 8 == 0:
        R = _plan_fused_rows(BH, W, Cin_p, CG, xb, wb, ob, tm_target, budget)

    if R is not None:
        # kh-split weights, columns ordered (kw, co).
        w0 = jnp.transpose(w_cd[:, :, 0, :], (0, 2, 1)).reshape(Cin_p, CG)
        w1 = jnp.transpose(w_cd[:, :, 1, :], (0, 2, 1)).reshape(Cin_p, CG)
        b_g = jnp.tile(bias_f32, kW).reshape(1, CG)
        return _fused_call(x_flat, w0, w1, b_g, B=B, H=H, W=W, R=R,
                           out_dtype=out_dtype, compute_dtype=compute_dtype,
                           vmem_limit=vmem_limit)

    # Fallback: plain GEMM with columns ordered (kh, kw, co) + XLA epilogue interleave.
    w_cols = jnp.transpose(w_cd, (0, 2, 3, 1)).reshape(Cin_p, kH * kW * Cout)
    b_cols = jnp.tile(bias_f32, kH * kW).reshape(1, kH * kW * Cout)
    y = _fallback_gemm(x_flat, w_cols, b_cols, tm_target=tm_target, tn_target=tn_target,
                       out_dtype=out_dtype, compute_dtype=compute_dtype,
                       budget=budget, vmem_limit=vmem_limit)
    y = y.reshape(B, H, W, kH, kW, Cout)
    y = jnp.transpose(y, (0, 1, 3, 2, 4, 5)).reshape(B, kH * H, kW * W, Cout)
    return y


@functools.partial(jax.jit, static_argnames=("tm_target", "tn_target", "compute_dtype",
                                              "force_fallback"))
def up_conv_forward(x, weight, bias, *, tm_target=None, tn_target=512,
                    compute_dtype=jnp.bfloat16, force_fallback=False):
    """ConvTranspose2d(Cin, Cout, kernel_size=2, stride=2), NCHW (PyTorch layout).

    x: (B, Cin, H, W)   weight: (Cin, Cout, 2, 2)   bias: (Cout,)  ->  (B, Cout, 2H, 2W)
    compute_dtype=None runs the MXU in f32 (exact); bf16 (default) keeps f32 accumulation.
    """
    B, Cin, H, W = x.shape
    Cin_w, Cout, kH, kW = weight.shape
    assert Cin_w == Cin and (kH, kW) == (2, 2)
    # NCHW parity costs one input and one output layout pass; use the NHWC entry point
    # when the surrounding model can run channels-last.
    x_flat = jnp.transpose(x, (0, 2, 3, 1)).reshape(B * H * W, Cin)
    y = _up_conv_core(x_flat, weight, bias, B, H, W, tm_target=tm_target,
                      tn_target=tn_target, compute_dtype=compute_dtype,
                      force_fallback=force_fallback)
    return jnp.transpose(y, (0, 3, 1, 2))


@functools.partial(jax.jit, static_argnames=("tm_target", "tn_target", "compute_dtype",
                                              "force_fallback"))
def up_conv_forward_nhwc(x, weight, bias, *, tm_target=None, tn_target=512,
                         compute_dtype=jnp.bfloat16, force_fallback=False):
    """Channels-last variant: x (B, H, W, Cin) -> (B, 2H, 2W, Cout). No layout passes."""
    B, H, W, Cin = x.shape
    Cin_w, Cout, kH, kW = weight.shape
    assert Cin_w == Cin and (kH, kW) == (2, 2)
    x_flat = x.reshape(B * H * W, Cin)
    return _up_conv_core(x_flat, weight, bias, B, H, W, tm_target=tm_target,
                         tn_target=tn_target, compute_dtype=compute_dtype,
                         force_fallback=force_fallback)


def _reference(x, weight, bias):
    # Direct einsum implementation of ConvTranspose2d (k=2, s=2), NCHW.
    B, Cin, H, W = x.shape
    _, Cout, kH, kW = weight.shape
    y = jnp.einsum("bchw,cokl->bohkwl", x, weight)
    y = y.reshape(B, Cout, H * kH, W * kW)
    return y + bias[None, :, None, None]


if __name__ == "__main__":
    key = jax.random.PRNGKey(0)
    k_x, k_w, k_b = jax.random.split(key, 3)

    B, Cin, H, W = 2, 4, 16, 16
    Cout = 8
    kH = kW = 2

    bound = 1.0 / (Cin * kH * kW) ** 0.5
    x = jax.random.normal(k_x, (B, Cin, H, W), dtype=jnp.float32)
    weight = jax.random.uniform(k_w, (Cin, Cout, kH, kW), dtype=jnp.float32,
                                minval=-bound, maxval=bound)
    bias = jax.random.uniform(k_b, (Cout,), dtype=jnp.float32,
                              minval=-bound, maxval=bound)

    ref = _reference(x, weight, bias)

    # 1) f32-operand fused path (exact parity with the PyTorch module).
    out_f32 = jax.block_until_ready(up_conv_forward(x, weight, bias, compute_dtype=None))
    assert out_f32.shape == (B, Cout, 2 * H, 2 * W), out_f32.shape
    assert jnp.allclose(out_f32, ref, atol=1e-5, rtol=1e-5), "f32 fused mismatch"

    # 2) default bf16-operand path (f32 accumulation) - looser tolerance.
    out_bf16 = jax.block_until_ready(up_conv_forward(x, weight, bias))
    assert jnp.allclose(out_bf16, ref, atol=5e-2, rtol=5e-2), "bf16 fused mismatch"

    # 3) channels-last entry point (zero layout passes).
    x_nhwc = jnp.transpose(x, (0, 2, 3, 1))
    out_nhwc = jax.block_until_ready(
        up_conv_forward_nhwc(x_nhwc, weight, bias, compute_dtype=None))
    assert out_nhwc.shape == (B, 2 * H, 2 * W, Cout), out_nhwc.shape
    assert jnp.allclose(jnp.transpose(out_nhwc, (0, 3, 1, 2)), ref,
                        atol=1e-5, rtol=1e-5), "NHWC mismatch"

    # 4) generic K-tiled GEMM fallback (exercised explicitly for coverage).
    out_fb = jax.block_until_ready(
        up_conv_forward(x, weight, bias, compute_dtype=None, force_fallback=True))
    assert jnp.allclose(out_fb, ref, atol=1e-5, rtol=1e-5), "fallback mismatch"

    print("KERNEL_OK")
</pallas_src>

<mosaic_0001>
module attributes {stable_mosaic.version = 11 : i64} {
  func.func @_fused_kernel(%arg0: i32, %arg1: memref<256x4xf32, #tpu.memory_space<vmem>>, %arg2: memref<4x16xf32, #tpu.memory_space<vmem>>, %arg3: memref<4x16xf32, #tpu.memory_space<vmem>>, %arg4: memref<1x16xf32, #tpu.memory_space<vmem>>, %arg5: memref<16x2x16x16xf32, #tpu.memory_space<vmem>>) attributes {dimension_semantics = [#tpu.dimension_semantics<parallel>], iteration_bounds = array<i64: 2>, scalar_prefetch = 0 : i64, scratch_operands = 0 : i64, tpu.core_type = #tpu.core_type<tc>, window_params = [{transform_indices = @transform_0, window_bounds = array<i64: 256, 4>}, {pipeline_mode = #tpu.pipeline_mode<synchronous>, transform_indices = @transform_1, window_bounds = array<i64: 4, 16>}, {pipeline_mode = #tpu.pipeline_mode<synchronous>, transform_indices = @transform_2, window_bounds = array<i64: 4, 16>}, {pipeline_mode = #tpu.pipeline_mode<synchronous>, transform_indices = @transform_3, window_bounds = array<i64: 1, 16>}, {transform_indices = @transform_4, window_bounds = array<i64: 16, 2, 16, 16>}]} {
    %c0 = arith.constant 0 : index
    %c0_0 = arith.constant 0 : index
    %0 = vector.load %arg1[%c0, %c0_0] : memref<256x4xf32, #tpu.memory_space<vmem>>, vector<256x4xf32>
    %c0_1 = arith.constant 0 : index
    %c0_2 = arith.constant 0 : index
    %1 = vector.load %arg4[%c0_1, %c0_2] : memref<1x16xf32, #tpu.memory_space<vmem>>, vector<1x16xf32>
    %c0_3 = arith.constant 0 : index
    %c0_4 = arith.constant 0 : index
    %2 = vector.load %arg2[%c0_3, %c0_4] : memref<4x16xf32, #tpu.memory_space<vmem>>, vector<4x16xf32>
    %cst = arith.constant dense<0.000000e+00> : vector<256x16xf32>
    %3 = tpu.matmul %0, %2, %cst {dimension_numbers = #tpu.dot_dimension_numbers<[1], [0], [0], [1], [0, 0, 1, 1], [], []>} : vector<256x4xf32>, vector<4x16xf32>, vector<256x16xf32> -> vector<256x16xf32>
    %4 = vector.broadcast %1 : vector<1x16xf32> to vector<256x16xf32>
    %5 = arith.addf %3, %4 : vector<256x16xf32>
    %c0_5 = arith.constant 0 : index
    %c0_6 = arith.constant 0 : index
    %6 = vector.load %arg3[%c0_5, %c0_6] : memref<4x16xf32, #tpu.memory_space<vmem>>, vector<4x16xf32>
    %cst_7 = arith.constant dense<0.000000e+00> : vector<256x16xf32>
    %7 = tpu.matmul %0, %6, %cst_7 {dimension_numbers = #tpu.dot_dimension_numbers<[1], [0], [0], [1], [0, 0, 1, 1], [], []>} : vector<256x4xf32>, vector<4x16xf32>, vector<256x16xf32> -> vector<256x16xf32>
    %8 = vector.broadcast %1 : vector<1x16xf32> to vector<256x16xf32>
    %9 = arith.addf %7, %8 : vector<256x16xf32>
    %10 = vector.shape_cast %5 : vector<256x16xf32> to vector<16x16x16xf32>
    %c0_8 = arith.constant 0 : index
    %c0_9 = arith.constant 0 : index
    %c0_10 = arith.constant 0 : index
    %c0_11 = arith.constant 0 : index
    %11 = vector.load %arg5[%c0_8, %c0_9, %c0_10, %c0_11] : memref<16x2x16x16xf32, #tpu.memory_space<vmem>>, vector<16x1x16x16xf32>
    %12 = vector.shape_cast %11 : vector<16x1x16x16xf32> to vector<16x16x16xf32>
    %13 = vector.shape_cast %10 : vector<16x16x16xf32> to vector<16x1x16x16xf32>
    tpu.vector_store %arg5[%c0_8, %c0_9, %c0_10, %c0_11], %13 {strides = array<i32>} : memref<16x2x16x16xf32, #tpu.memory_space<vmem>>, vector<16x1x16x16xf32>,
    %14 = vector.shape_cast %9 : vector<256x16xf32> to vector<16x16x16xf32>
    %c0_12 = arith.constant 0 : index
    %c1 = arith.constant 1 : index
    %c0_13 = arith.constant 0 : index
    %c0_14 = arith.constant 0 : index
    %15 = vector.load %arg5[%c0_12, %c1, %c0_13, %c0_14] : memref<16x2x16x16xf32, #tpu.memory_space<vmem>>, vector<16x1x16x16xf32>
    %16 = vector.shape_cast %15 : vector<16x1x16x16xf32> to vector<16x16x16xf32>
    %17 = vector.shape_cast %14 : vector<16x16x16xf32> to vector<16x1x16x16xf32>
    tpu.vector_store %arg5[%c0_12, %c1, %c0_13, %c0_14], %17 {strides = array<i32>} : memref<16x2x16x16xf32, #tpu.memory_space<vmem>>, vector<16x1x16x16xf32>,
    return
  }
  func.func @transform_0(%arg0: i32) -> (i32, i32) {
    %c0_i32 = arith.constant 0 : i32
    %c0_i32_0 = arith.constant 0 : i32
    return %arg0, %c0_i32 : i32, i32
  }
  func.func @transform_1(%arg0: i32) -> (i32, i32) {
    %c0_i32 = arith.constant 0 : i32
    %c0_i32_0 = arith.constant 0 : i32
    %c0_i32_1 = arith.constant 0 : i32
    return %c0_i32, %c0_i32_0 : i32, i32
  }
  func.func @transform_2(%arg0: i32) -> (i32, i32) {
    %c0_i32 = arith.constant 0 : i32
    %c0_i32_0 = arith.constant 0 : i32
    %c0_i32_1 = arith.constant 0 : i32
    return %c0_i32, %c0_i32_0 : i32, i32
  }
  func.func @transform_3(%arg0: i32) -> (i32, i32) {
    %c0_i32 = arith.constant 0 : i32
    %c0_i32_0 = arith.constant 0 : i32
    %c0_i32_1 = arith.constant 0 : i32
    return %c0_i32, %c0_i32_0 : i32, i32
  }
  func.func @transform_4(%arg0: i32) -> (i32, i32, i32, i32) {
    %c0_i32 = arith.constant 0 : i32
    %c0_i32_0 = arith.constant 0 : i32
    %c0_i32_1 = arith.constant 0 : i32
    %c0_i32_2 = arith.constant 0 : i32
    return %arg0, %c0_i32, %c0_i32_0, %c0_i32_1 : i32, i32, i32, i32
  }
}

</mosaic_0001>

<llo_original>
// kernel: tile.8
$region0: #{tile.8}
  #allocation0 [shape = 's32[1]{0}', space=sflag, size = 0x4, scoped, tag = 'scoped memory for tile.8']
  %s0 = inlined_call_operand.vmem [shape: f32[8], index: 0, kind: input, shape index: {}]
  %s1 = inlined_call_operand.vmem [shape: f32[2,8], index: 1, kind: output, shape index: {}]
  // Predicated region
  $region2: #{tile.8} parent=0 // pred_check
    _
  $region3: #{tile.8} parent=0 // pred_check_branch
    %3 = sbr.rel (0) target = $region5
  $region4: #{tile.8} parent=0 // pred_region
    _
  $region5: #{tile.8} parent=0 // pred_fallthru
    _
  %v4 = vld [vmem:[%s0] ss:$0 sm:$0xff]
  %5 = vst [vmem:[%s1] sm:$0x3] %v4

// kernel: tile.9
$region0: #{tile.9}
  %s0 = inlined_call_operand.vmem [shape: f32[2,8], index: 0, kind: input, shape index: {}]
  %s1 = inlined_call_operand.vmem [shape: f32[1,16], index: 1, kind: output, shape index: {}]
  $region1: #{tile.9} parent=0
    #allocation0 [shape = 'u8[4096]{0}', space=vmem, size = 0x1000, scoped, tag = 'scoped mem for output reshape']
    #allocation1 [shape = 'u8[4096]{0}', space=vmem, size = 0x1000, scoped, tag = 'scoped mem for input reshape']
    %s3 = sshll.u32 1, 2
    %s4 = ssub.s32 %s3, 1
    %v5 = vld [vmem:[%s0] sm:%s4]
    %6 = vst [vmem:[#allocation1] sm:%s4] %v5
    %v7 = vld [vmem:[#allocation1] sm:$0x1]
    %vm8 = vcmask 64512
    %9 = vst.msk [vmem:[#allocation0] sm:$0x1] %vm8, %v7
    %s10 = scalar_lea.vmem [#allocation1], 1
    %v11 = vld [vmem:[%s10] sm:$0x1]
    %12 = vrot.lane.b32.xlu0 %v11, 8
    %v13 = vpop.permute.xlu0 %12
    %vm14 = vcmask 130112
    %15 = vst.msk [vmem:[#allocation0] sm:$0x1] %vm14, %v13
    %s17 = sshll.u32 1, 1
    %s18 = ssub.s32 %s17, 1
    %v20 = vld [vmem:[#allocation0] sm:%s18]
    %s21 = sshll.u32 1, 1
    %s22 = ssub.s32 %s21, 1
    %23 = vst [vmem:[%s1] sm:%s22] %v20

// kernel: up_conv_forward.1
$region0: #{up_conv_forward.1}
  #allocation0 [shape = 'u32[]', space=smem, size = 0x4, offset = 0x4, fixed_abs, tag = 'smem constant byte address 0x4 - core index']
  #allocation1 [shape = 'u32[144,128]{1,0:T(1,128)}', space=vmem, size = 0x12000, scoped, tag = 'internal scratch']
  %s0 = inlined_call_operand.vmem [shape: f32[512,4], index: 0, kind: input, shape index: {}]
  %s1 = inlined_call_operand.vmem [shape: f32[4,16], index: 1, kind: input, shape index: {}]
  %s2 = inlined_call_operand.vmem [shape: f32[4,16], index: 2, kind: input, shape index: {}]
  %s3 = inlined_call_operand.vmem [shape: f32[1,16], index: 3, kind: input, shape index: {}]
  %s4 = inlined_call_operand.vmem [shape: f32[32,2,16,16], index: 4, kind: output, shape index: {}]
  %s5 = sld [smem:[#allocation0]]
  $region49: #{up_conv_forward.1} parent=0
    _
  %s7 = ssub.s32 1, %s5
  %s8 = scalar_select 0, %s7, %s5
  loop: start=0, step=1, limit=4
  $region2: #{up_conv_forward.1} parent=0 // loop_pre_header
    _
  $region3: #{up_conv_forward.1} parent=0 // loop_header
    %s10 = sphi 0, %s14
    %p11 = scmp.ge.s32.totalorder %s10, 4
    %s20 = sphi 0, %s22
    %s23 = sphi 0, %s20
    %s24 = sphi 0, %s23
    %s40 = sphi 0, %s24
    %s44 = sphi 0, %s44
    %s46 = sphi 0, %s44
    %s47 = sphi 0, %s46
    %s61 = sphi 0, %s47
    %s65 = sphi 0, %s65
    %s67 = sphi 0, %s65
    %s68 = sphi 0, %s67
    %s82 = sphi 0, %s68
    %s86 = sphi 0, %s86
    %s88 = sphi 0, %s86
    %s89 = sphi 0, %s88
    %s103 = sphi 0, %s89
    %s109 = sphi 0, %s111
    %s112 = sphi 0, %s109
    %s113 = sphi 0, %s112
    %s129 = sphi 0, %s113
  $region4: #{up_conv_forward.1} parent=0 // loop_header_branch
    %13 = sbr.rel (%p11) target = $region8
  $region5: #{up_conv_forward.1} parent=0 // loop_body
    %s15 = ssub.s32 %s10, 1
    %s16 = ssub.s32 %s10, 2
    %s17 = sadd.s32 %s10, 1
    %s18 = ssub.s32 %s10, %s17
    %p19 = scmp.eq.s32.totalorder %s18, 0
    %s21 = sadd.s32 %s20, 1
    %s22 = scalar_select %p19, %s20, %s21
    %p25 = pneg %p19
    %p26 = scmp.eq.s32.totalorder %s10, 1
    %p27 = por %p25, %p26
    %p28 = scmp.ne.s32.totalorder %s20, %s23
    %p29 = scmp.eq.s32.totalorder %s10, 0
    %p30 = por %p28, %p29
    %p31 = scmp.ne.s32.totalorder %s20, %s23
    %p32 = scmp.eq.s32.totalorder %s15, 1
    %p33 = por %p31, %p32
    %p34 = scmp.ne.s32.totalorder %s23, %s24
    %p35 = scmp.eq.s32.totalorder %s15, 0
    %p36 = por %p34, %p35
    %p37 = scmp.ne.s32.totalorder %s23, %s24
    %p38 = scmp.eq.s32.totalorder %s16, 1
    %p39 = por %p37, %p38
    %p41 = scmp.ne.s32.totalorder %s24, %s40
    %p42 = scmp.eq.s32.totalorder %s16, 0
    %p43 = por %p41, %p42
    %s45 = sadd.s32 %s44, 1
    %p48 = scmp.eq.s32.totalorder %s10, 1
    %p49 = scmp.ne.s32.totalorder %s44, %s46
    %p50 = scmp.eq.s32.totalorder %s10, 0
    %p51 = por %p49, %p50
    %p52 = scmp.ne.s32.totalorder %s44, %s46
    %p53 = scmp.eq.s32.totalorder %s15, 1
    %p54 = por %p52, %p53
    %p55 = scmp.ne.s32.totalorder %s46, %s47
    %p56 = scmp.eq.s32.totalorder %s15, 0
    %p57 = por %p55, %p56
    %p58 = scmp.ne.s32.totalorder %s46, %s47
    %p59 = scmp.eq.s32.totalorder %s16, 1
    %p60 = por %p58, %p59
    %p62 = scmp.ne.s32.totalorder %s47, %s61
    %p63 = scmp.eq.s32.totalorder %s16, 0
    %p64 = por %p62, %p63
    %s66 = sadd.s32 %s65, 1
    %p69 = scmp.eq.s32.totalorder %s10, 1
    %p70 = scmp.ne.s32.totalorder %s65, %s67
    %p71 = scmp.eq.s32.totalorder %s10, 0
    %p72 = por %p70, %p71
    %p73 = scmp.ne.s32.totalorder %s65, %s67
    %p74 = scmp.eq.s32.totalorder %s15, 1
    %p75 = por %p73, %p74
    %p76 = scmp.ne.s32.totalorder %s67, %s68
    %p77 = scmp.eq.s32.totalorder %s15, 0
    %p78 = por %p76, %p77
    %p79 = scmp.ne.s32.totalorder %s67, %s68
    %p80 = scmp.eq.s32.totalorder %s16, 1
    %p81 = por %p79, %p80
    %p83 = scmp.ne.s32.totalorder %s68, %s82
    %p84 = scmp.eq.s32.totalorder %s16, 0
    %p85 = por %p83, %p84
    %s87 = sadd.s32 %s86, 1
    %p90 = scmp.eq.s32.totalorder %s10, 1
    %p91 = scmp.ne.s32.totalorder %s86, %s88
    %p92 = scmp.eq.s32.totalorder %s10, 0
    %p93 = por %p91, %p92
    %p94 = scmp.ne.s32.totalorder %s86, %s88
    %p95 = scmp.eq.s32.totalorder %s15, 1
    %p96 = por %p94, %p95
    %p97 = scmp.ne.s32.totalorder %s88, %s89
    %p98 = scmp.eq.s32.totalorder %s15, 0
    %p99 = por %p97, %p98
    %p100 = scmp.ne.s32.totalorder %s88, %s89
    %p101 = scmp.eq.s32.totalorder %s16, 1
    %p102 = por %p100, %p101
    %p104 = scmp.ne.s32.totalorder %s89, %s103
    %p105 = scmp.eq.s32.totalorder %s16, 0
    %p106 = por %p104, %p105
    %s107 = ssub.s32 %s10, %s17
    %p108 = scmp.eq.s32.totalorder %s107, 0
    %s110 = sadd.s32 %s109, 1
    %s111 = scalar_select %p108, %s109, %s110
    %p114 = pneg %p108
    %p115 = scmp.eq.s32.totalorder %s10, 1
    %p116 = por %p114, %p115
    %p117 = scmp.ne.s32.totalorder %s109, %s112
    %p118 = scmp.eq.s32.totalorder %s10, 0
    %p119 = por %p117, %p118
    %p120 = scmp.ne.s32.totalorder %s109, %s112
    %p121 = scmp.eq.s32.totalorder %s15, 1
    %p122 = por %p120, %p121
    %p123 = scmp.ne.s32.totalorder %s112, %s113
    %p124 = scmp.eq.s32.totalorder %s15, 0
    %p125 = por %p123, %p124
    %p126 = scmp.ne.s32.totalorder %s112, %s113
    %p127 = scmp.eq.s32.totalorder %s16, 1
    %p128 = por %p126, %p127
    %p130 = scmp.ne.s32.totalorder %s113, %s129
    %p131 = scmp.eq.s32.totalorder %s16, 0
    %p132 = por %p130, %p131
    %p133 = scmp.le.s32.totalorder 1, %s10
    %p134 = scmp.lt.s32.totalorder %s10, 3
    %p135 = pnand %p133, %p134
    %p136 = pneg %p135
    // Predicated region
    $region9: #{up_conv_forward.1} parent=5 // pred_check
      _
    $region10: #{up_conv_forward.1} parent=5 // pred_check_branch
      %138 = sbr.rel (%p135) target = $region12
    $region11: #{up_conv_forward.1} parent=5 // pred_region
      %s139 = ssub.s32 %s10, 1
      // Predicated region
      $region13: #{up_conv_forward.1} parent=11 // pred_check
        %p140 = pneg %p57
      $region14: #{up_conv_forward.1} parent=11 // pred_check_branch
        %142 = sbr.rel (%p140) target = $region16
      $region15: #{up_conv_forward.1} parent=11 // pred_region
        _
      $region16: #{up_conv_forward.1} parent=11 // pred_fallthru
        _
      // Predicated region
      $region17: #{up_conv_forward.1} parent=11 // pred_check
        %p143 = pneg %p78
      $region18: #{up_conv_forward.1} parent=11 // pred_check_branch
        %145 = sbr.rel (%p143) target = $region20
      $region19: #{up_conv_forward.1} parent=11 // pred_region
        _
      $region20: #{up_conv_forward.1} parent=11 // pred_fallthru
        _
      // Predicated region
      $region21: #{up_conv_forward.1} parent=11 // pred_check
        %p146 = pneg %p99
      $region22: #{up_conv_forward.1} parent=11 // pred_check_branch
        %148 = sbr.rel (%p146) target = $region24
      $region23: #{up_conv_forward.1} parent=11 // pred_region
        _
      $region24: #{up_conv_forward.1} parent=11 // pred_fallthru
        _
    $region12: #{up_conv_forward.1} parent=5 // pred_fallthru
      _
    %p149 = scmp.lt.s32.totalorder %s10, 2
    // Predicated region
    $region25: #{up_conv_forward.1} parent=5 // pred_check
      %p150 = pneg %p149
    $region26: #{up_conv_forward.1} parent=5 // pred_check_branch
      %152 = sbr.rel (%p150) target = $region28
    $region27: #{up_conv_forward.1} parent=5 // pred_region
      // Predicated region
      $region29: #{up_conv_forward.1} parent=27 // pred_check
        %p153 = pneg %p30
      $region30: #{up_conv_forward.1} parent=27 // pred_check_branch
        %155 = sbr.rel (%p153) target = $region32
      $region31: #{up_conv_forward.1} parent=27 // pred_region
        %s156 = smul.u32 32, %s10
        %p157 = scmp.lt.s32.totalorder %s156, 63
        %s158 = scalar_select %p157, %s156, 63
        %s159 = smul.addr %s158, 8
        %s160 = scalar_lea.vmem %s0, %s159
        %s161 = smul.u32 32, %s10
      $region32: #{up_conv_forward.1} parent=27 // pred_fallthru
        _
    $region28: #{up_conv_forward.1} parent=5 // pred_fallthru
      _
    %p162 = scmp.le.s32.totalorder 1, %s10
    %p163 = scmp.lt.s32.totalorder %s10, 3
    %p164 = pnand %p162, %p163
    %p165 = pneg %p164
    // Predicated region
    $region33: #{up_conv_forward.1} parent=5 // pred_check
      _
    $region34: #{up_conv_forward.1} parent=5 // pred_check_branch
      %167 = sbr.rel (%p164) target = $region36
    $region35: #{up_conv_forward.1} parent=5 // pred_region
      %s168 = ssub.s32 %s10, 1
      %s169 = smul.u32 32, %s15
      %p170 = scmp.lt.s32.totalorder %s169, 63
      %s171 = scalar_select %p170, %s169, 63
      %s172 = smul.addr %s171, 8
      %s173 = scalar_lea.vmem %s0, %s172
      %p174 = pneg %p36
      %p175 = pneg %p33
      %p176 = pneg %p57
      %p177 = pneg %p54
      %p178 = pneg %p78
      %p179 = pneg %p75
      %p180 = pneg %p99
      %p181 = pneg %p96
      %p182 = pneg %p125
      %p183 = pneg %p122
      %s184 = smul.u32 16, %s15
      %p185 = scmp.lt.s32.totalorder %s184, 31
      %s186 = scalar_select %p185, %s184, 31
      %s187 = smul.addr %s186, 4
      %s188 = smul.addr %s187, 8
      %s189 = scalar_lea.vmem %s4, %s188
      %s190 = smul.u32 32, %s15
      %p191 = scmp.lt.s32.totalorder %s190, 63
      %s192 = scalar_select %p191, %s190, 63
      %s193 = smul.addr %s192, 8
      %s194 = scalar_lea.vmem %s0, %s193
      %s195 = smul.u32 32, %s15
      %s196 = smul.u32 16, %s15
      %p197 = scmp.lt.s32.totalorder %s196, 31
      %s198 = scalar_select %p197, %s196, 31
      %s199 = smul.addr %s198, 4
      %s200 = smul.addr %s199, 8
      %s201 = scalar_lea.vmem %s4, %s200
      %s202 = smul.u32 16, %s15
      %v203 = vld [vmem:[%s194] sm:$0xff]
      %v204 = vld [vmem:[%s194 + $0x8] sm:$0xff]
      %v205 = vld [vmem:[%s194 + $0x10] sm:$0xff]
      %v206 = vld [vmem:[%s194 + $0x18] sm:$0xff]
      %v207 = vld [vmem:[%s194 + $0x20] sm:$0xff]
      %v208 = vld [vmem:[%s194 + $0x28] sm:$0xff]
      %v209 = vld [vmem:[%s194 + $0x30] sm:$0xff]
      %v210 = vld [vmem:[%s194 + $0x38] sm:$0xff]
      %v211 = vld [vmem:[%s194 + $0x40] sm:$0xff]
      %v212 = vld [vmem:[%s194 + $0x48] sm:$0xff]
      %v213 = vld [vmem:[%s194 + $0x50] sm:$0xff]
      %v214 = vld [vmem:[%s194 + $0x58] sm:$0xff]
      %v215 = vld [vmem:[%s194 + $0x60] sm:$0xff]
      %v216 = vld [vmem:[%s194 + $0x68] sm:$0xff]
      %v217 = vld [vmem:[%s194 + $0x70] sm:$0xff]
      %v218 = vld [vmem:[%s194 + $0x78] sm:$0xff]
      %v219 = vld [vmem:[%s194 + $0x80] sm:$0xff]
      %v220 = vld [vmem:[%s194 + $0x88] sm:$0xff]
      %v221 = vld [vmem:[%s194 + $0x90] sm:$0xff]
      %v222 = vld [vmem:[%s194 + $0x98] sm:$0xff]
      %v223 = vld [vmem:[%s194 + $0xa0] sm:$0xff]
      %v224 = vld [vmem:[%s194 + $0xa8] sm:$0xff]
      %v225 = vld [vmem:[%s194 + $0xb0] sm:$0xff]
      %v226 = vld [vmem:[%s194 + $0xb8] sm:$0xff]
      %v227 = vld [vmem:[%s194 + $0xc0] sm:$0xff]
      %v228 = vld [vmem:[%s194 + $0xc8] sm:$0xff]
      %v229 = vld [vmem:[%s194 + $0xd0] sm:$0xff]
      %v230 = vld [vmem:[%s194 + $0xd8] sm:$0xff]
      %v231 = vld [vmem:[%s194 + $0xe0] sm:$0xff]
      %v232 = vld [vmem:[%s194 + $0xe8] sm:$0xff]
      %v233 = vld [vmem:[%s194 + $0xf0] sm:$0xff]
      %v234 = vld [vmem:[%s194 + $0xf8] sm:$0xff]
      %v235 = vld [vmem:[%s3] sm:$0x1]
      %v236 = vld [vmem:[%s1] sm:$0xf]
      %v238 = vlaneseq
      %v239 = vshrl.u32 %v238, 7
      %v240 = vsub.s32 0, %v239
      %v241 = vrot.slane %v235, %v240
      %vm243 = vcmask 31744
      %v245 = vsel %vm243, %v203, 0
      %v248 = vsel %vm243, %v204, 0
      %v251 = vsel %vm243, %v205, 0
      %v254 = vsel %vm243, %v206, 0
      %v257 = vsel %vm243, %v207, 0
      %v260 = vsel %vm243, %v208, 0
      %v263 = vsel %vm243, %v209, 0
      %v266 = vsel %vm243, %v210, 0
      %v269 = vsel %vm243, %v211, 0
      %v272 = vsel %vm243, %v212, 0
      %v275 = vsel %vm243, %v213, 0
      %v278 = vsel %vm243, %v214, 0
      %v281 = vsel %vm243, %v215, 0
      %v284 = vsel %vm243, %v216, 0
      %v287 = vsel %vm243, %v217, 0
      %v290 = vsel %vm243, %v218, 0
      %v293 = vsel %vm243, %v219, 0
      %v296 = vsel %vm243, %v220, 0
      %v299 = vsel %vm243, %v221, 0
      %v302 = vsel %vm243, %v222, 0
      %v305 = vsel %vm243, %v223, 0
      %v308 = vsel %vm243, %v224, 0
      %v311 = vsel %vm243, %v225, 0
      %v314 = vsel %vm243, %v226, 0
      %v317 = vsel %vm243, %v227, 0
      %v320 = vsel %vm243, %v228, 0
      %v323 = vsel %vm243, %v229, 0
      %v326 = vsel %vm243, %v230, 0
      %v329 = vsel %vm243, %v231, 0
      %v332 = vsel %vm243, %v232, 0
      %v335 = vsel %vm243, %v233, 0
      %v338 = vsel %vm243, %v234, 0
      %vm340 = vcmask 1043456
      %v342 = vsel %vm340, %v236, 0
      %344 = vmatprep.subr.mxu0 0.0
      %345 = vmatpush1.msra.mxu0 0.0
      %346 = vmatprep.subr.mxu0 0.0
      %347 = vmatpush1.msra.mxu0 0.0
      %348 = vmatprep.subr.mxu0 0.0
      %349 = vmatpush1.msra.mxu0 0.0
      %350 = vmatprep.subr.mxu0 0.0
      %351 = vmatpush1.msra.mxu0 0.0
      %352 = vmatprep.subr.mxu0 0.0
      %353 = vmatpush1.msra.mxu0 0.0
      %354 = vmatprep.subr.mxu0 0.0
      %355 = vmatpush1.msra.mxu0 0.0
      %356 = vmatprep.subr.mxu0 0.0
      %357 = vmatpush1.msra.mxu0 0.0
      %358 = vmatprep.subr.mxu0 0.0
      %359 = vmatpush1.msra.mxu0 0.0
      %360 = vmatprep.subr.mxu0 0.0
      %361 = vmatpush1.msra.mxu0 0.0
      %362 = vmatprep.subr.mxu0 0.0
      %363 = vmatpush1.msra.mxu0 0.0
      %364 = vmatprep.subr.mxu0 0.0
      %365 = vmatpush1.msra.mxu0 0.0
      %366 = vmatprep.subr.mxu0 0.0
      %367 = vmatpush1.msra.mxu0 0.0
      %368 = vmatprep.subr.mxu0 0.0
      %369 = vmatpush1.msra.mxu0 0.0
      %370 = vmatprep.subr.mxu0 0.0
      %371 = vmatpush1.msra.mxu0 0.0
      %372 = vmatprep.subr.mxu0 0.0
      %373 = vmatpush1.msra.mxu0 0.0
      %374 = vmatprep.subr.mxu0 0.0
      %375 = vmatpush1.msra.mxu0 %v342
      %376 = vmatprep.subr.mxu0 0.0
      %377 = vmatpush2.msra.mxu0 0.0
      %378 = vmatprep.subr.mxu0 0.0
      %379 = vmatpush2.msra.mxu0 0.0
      %380 = vmatprep.subr.mxu0 0.0
      %381 = vmatpush2.msra.mxu0 0.0
      %382 = vmatprep.subr.mxu0 0.0
      %383 = vmatpush2.msra.mxu0 0.0
      %384 = vmatprep.subr.mxu0 0.0
      %385 = vmatpush2.msra.mxu0 0.0
      %386 = vmatprep.subr.mxu0 0.0
      %387 = vmatpush2.msra.mxu0 0.0
      %388 = vmatprep.subr.mxu0 0.0
      %389 = vmatpush2.msra.mxu0 0.0
      %390 = vmatprep.subr.mxu0 0.0
      %391 = vmatpush2.msra.mxu0 0.0
      %392 = vmatprep.subr.mxu0 0.0
      %393 = vmatpush2.msra.mxu0 0.0
      %394 = vmatprep.subr.mxu0 0.0
      %395 = vmatpush2.msra.mxu0 0.0
      %396 = vmatprep.subr.mxu0 0.0
      %397 = vmatpush2.msra.mxu0 0.0
      %398 = vmatprep.subr.mxu0 0.0
      %399 = vmatpush2.msra.mxu0 0.0
      %400 = vmatprep.subr.mxu0 0.0
      %401 = vmatpush2.msra.mxu0 0.0
      %402 = vmatprep.subr.mxu0 0.0
      %403 = vmatpush2.msra.mxu0 0.0
      %404 = vmatprep.subr.mxu0 0.0
      %405 = vmatpush2.msra.mxu0 0.0
      %406 = vmatprep.subr.mxu0 0.0
      %407 = vmatpush2.msra.mxu0 0.0
      %408 = vmatprep.mubr.f32.mxu0 0.0
      %409 = vmatmul.mubr.f32.gmra.mxu0 %v245
      %v410 = vpop.f32.mrf.mxu0
      %v411 = vadd.f32 %v241, %v410
      %v412 = vpop.f32.mrf.mxu0
      %413 = vmatprep.mubr.f32.mxu0 0.0
      %414 = vmatmul.mubr.f32.gmra.mxu0 %v248
      %v415 = vpop.f32.mrf.mxu0
      %v416 = vadd.f32 %v241, %v415
      %v417 = vpop.f32.mrf.mxu0
      %418 = vmatprep.mubr.f32.mxu0 0.0
      %419 = vmatmul.mubr.f32.gmra.mxu0 %v251
      %v420 = vpop.f32.mrf.mxu0
      %v421 = vadd.f32 %v241, %v420
      %v422 = vpop.f32.mrf.mxu0
      %423 = vmatprep.mubr.f32.mxu0 0.0
      %424 = vmatmul.mubr.f32.gmra.mxu0 %v254
      %v425 = vpop.f32.mrf.mxu0
      %v426 = vadd.f32 %v241, %v425
      %v427 = vpop.f32.mrf.mxu0
      %428 = vmatprep.mubr.f32.mxu0 0.0
      %429 = vmatmul.mubr.f32.gmra.mxu0 %v257
      %v430 = vpop.f32.mrf.mxu0
      %v431 = vadd.f32 %v241, %v430
      %v432 = vpop.f32.mrf.mxu0
      %433 = vmatprep.mubr.f32.mxu0 0.0
      %434 = vmatmul.mubr.f32.gmra.mxu0 %v260
      %v435 = vpop.f32.mrf.mxu0
      %v436 = vadd.f32 %v241, %v435
      %v437 = vpop.f32.mrf.mxu0
      %438 = vmatprep.mubr.f32.mxu0 0.0
      %439 = vmatmul.mubr.f32.gmra.mxu0 %v263
      %v440 = vpop.f32.mrf.mxu0
      %v441 = vadd.f32 %v241, %v440
      %v442 = vpop.f32.mrf.mxu0
      %443 = vmatprep.mubr.f32.mxu0 0.0
      %444 = vmatmul.mubr.f32.gmra.mxu0 %v266
      %v445 = vpop.f32.mrf.mxu0
      %v446 = vadd.f32 %v241, %v445
      %v447 = vpop.f32.mrf.mxu0
      %448 = vmatprep.mubr.f32.mxu0 0.0
      %449 = vmatmul.mubr.f32.gmra.mxu0 %v269
      %v450 = vpop.f32.mrf.mxu0
      %v451 = vadd.f32 %v241, %v450
      %v452 = vpop.f32.mrf.mxu0
      %453 = vmatprep.mubr.f32.mxu0 0.0
      %454 = vmatmul.mubr.f32.gmra.mxu0 %v272
      %v455 = vpop.f32.mrf.mxu0
      %v456 = vadd.f32 %v241, %v455
      %v457 = vpop.f32.mrf.mxu0
      %458 = vmatprep.mubr.f32.mxu0 0.0
      %459 = vmatmul.mubr.f32.gmra.mxu0 %v275
      %v460 = vpop.f32.mrf.mxu0
      %v461 = vadd.f32 %v241, %v460
      %v462 = vpop.f32.mrf.mxu0
      %463 = vmatprep.mubr.f32.mxu0 0.0
      %464 = vmatmul.mubr.f32.gmra.mxu0 %v278
      %v465 = vpop.f32.mrf.mxu0
      %v466 = vadd.f32 %v241, %v465
      %v467 = vpop.f32.mrf.mxu0
      %468 = vmatprep.mubr.f32.mxu0 0.0
      %469 = vmatmul.mubr.f32.gmra.mxu0 %v281
      %v470 = vpop.f32.mrf.mxu0
      %v471 = vadd.f32 %v241, %v470
      %v472 = vpop.f32.mrf.mxu0
      %473 = vmatprep.mubr.f32.mxu0 0.0
      %474 = vmatmul.mubr.f32.gmra.mxu0 %v284
      %v475 = vpop.f32.mrf.mxu0
      %v476 = vadd.f32 %v241, %v475
      %v477 = vpop.f32.mrf.mxu0
      %478 = vmatprep.mubr.f32.mxu0 0.0
      %479 = vmatmul.mubr.f32.gmra.mxu0 %v287
      %v480 = vpop.f32.mrf.mxu0
      %v481 = vadd.f32 %v241, %v480
      %v482 = vpop.f32.mrf.mxu0
      %483 = vmatprep.mubr.f32.mxu0 0.0
      %484 = vmatmul.mubr.f32.gmra.mxu0 %v290
      %v485 = vpop.f32.mrf.mxu0
      %v486 = vadd.f32 %v241, %v485
      %v487 = vpop.f32.mrf.mxu0
      %488 = vmatprep.mubr.f32.mxu0 0.0
      %489 = vmatmul.mubr.f32.gmra.mxu0 %v293
      %v490 = vpop.f32.mrf.mxu0
      %v491 = vadd.f32 %v241, %v490
      %v492 = vpop.f32.mrf.mxu0
      %493 = vmatprep.mubr.f32.mxu0 0.0
      %494 = vmatmul.mubr.f32.gmra.mxu0 %v296
      %v495 = vpop.f32.mrf.mxu0
      %v496 = vadd.f32 %v241, %v495
      %v497 = vpop.f32.mrf.mxu0
      %498 = vmatprep.mubr.f32.mxu0 0.0
      %499 = vmatmul.mubr.f32.gmra.mxu0 %v299
      %v500 = vpop.f32.mrf.mxu0
      %v501 = vadd.f32 %v241, %v500
      %v502 = vpop.f32.mrf.mxu0
      %503 = vmatprep.mubr.f32.mxu0 0.0
      %504 = vmatmul.mubr.f32.gmra.mxu0 %v302
      %v505 = vpop.f32.mrf.mxu0
      %v506 = vadd.f32 %v241, %v505
      %v507 = vpop.f32.mrf.mxu0
      %508 = vmatprep.mubr.f32.mxu0 0.0
      %509 = vmatmul.mubr.f32.gmra.mxu0 %v305
      %v510 = vpop.f32.mrf.mxu0
      %v511 = vadd.f32 %v241, %v510
      %v512 = vpop.f32.mrf.mxu0
      %513 = vmatprep.mubr.f32.mxu0 0.0
      %514 = vmatmul.mubr.f32.gmra.mxu0 %v308
      %v515 = vpop.f32.mrf.mxu0
      %v516 = vadd.f32 %v241, %v515
      %v517 = vpop.f32.mrf.mxu0
      %518 = vmatprep.mubr.f32.mxu0 0.0
      %519 = vmatmul.mubr.f32.gmra.mxu0 %v311
      %v520 = vpop.f32.mrf.mxu0
      %v521 = vadd.f32 %v241, %v520
      %v522 = vpop.f32.mrf.mxu0
      %523 = vmatprep.mubr.f32.mxu0 0.0
      %524 = vmatmul.mubr.f32.gmra.mxu0 %v314
      %v525 = vpop.f32.mrf.mxu0
      %v526 = vadd.f32 %v241, %v525
      %v527 = vpop.f32.mrf.mxu0
      %528 = vmatprep.mubr.f32.mxu0 0.0
      %529 = vmatmul.mubr.f32.gmra.mxu0 %v317
      %v530 = vpop.f32.mrf.mxu0
      %v531 = vadd.f32 %v241, %v530
      %v532 = vpop.f32.mrf.mxu0
      %533 = vmatprep.mubr.f32.mxu0 0.0
      %534 = vmatmul.mubr.f32.gmra.mxu0 %v320
      %v535 = vpop.f32.mrf.mxu0
      %v536 = vadd.f32 %v241, %v535
      %v537 = vpop.f32.mrf.mxu0
      %538 = vmatprep.mubr.f32.mxu0 0.0
      %539 = vmatmul.mubr.f32.gmra.mxu0 %v323
      %v540 = vpop.f32.mrf.mxu0
      %v541 = vadd.f32 %v241, %v540
      %v542 = vpop.f32.mrf.mxu0
      %543 = vmatprep.mubr.f32.mxu0 0.0
      %544 = vmatmul.mubr.f32.gmra.mxu0 %v326
      %v545 = vpop.f32.mrf.mxu0
      %v546 = vadd.f32 %v241, %v545
      %v547 = vpop.f32.mrf.mxu0
      %548 = vmatprep.mubr.f32.mxu0 0.0
      %549 = vmatmul.mubr.f32.gmra.mxu0 %v329
      %v550 = vpop.f32.mrf.mxu0
      %v551 = vadd.f32 %v241, %v550
      %v552 = vpop.f32.mrf.mxu0
      %553 = vmatprep.mubr.f32.mxu0 0.0
      %554 = vmatmul.mubr.f32.gmra.mxu0 %v332
      %v555 = vpop.f32.mrf.mxu0
      %v556 = vadd.f32 %v241, %v555
      %v557 = vpop.f32.mrf.mxu0
      %558 = vmatprep.mubr.f32.mxu0 0.0
      %559 = vmatmul.mubr.f32.gmra.mxu0 %v335
      %v560 = vpop.f32.mrf.mxu0
      %v561 = vadd.f32 %v241, %v560
      %v562 = vpop.f32.mrf.mxu0
      %563 = vmatprep.mubr.f32.mxu0 0.0
      %564 = vmatmul.mubr.f32.gmra.mxu0 %v338
      %v565 = vpop.f32.mrf.mxu0
      %v566 = vadd.f32 %v241, %v565
      %v567 = vpop.f32.mrf.mxu0
      %568 = vdwg.mxu0
      %v569 = vld [vmem:[%s2] sm:$0xf]
      %v571 = vsel %vm340, %v569, 0
      %573 = vmatprep.subr.mxu0 0.0
      %574 = vmatpush1.msra.mxu0 0.0
      %575 = vmatprep.subr.mxu0 0.0
      %576 = vmatpush1.msra.mxu0 0.0
      %577 = vmatprep.subr.mxu0 0.0
      %578 = vmatpush1.msra.mxu0 0.0
      %579 = vmatprep.subr.mxu0 0.0
      %580 = vmatpush1.msra.mxu0 0.0
      %581 = vmatprep.subr.mxu0 0.0
      %582 = vmatpush1.msra.mxu0 0.0
      %583 = vmatprep.subr.mxu0 0.0
      %584 = vmatpush1.msra.mxu0 0.0
      %585 = vmatprep.subr.mxu0 0.0
      %586 = vmatpush1.msra.mxu0 0.0
      %587 = vmatprep.subr.mxu0 0.0
      %588 = vmatpush1.msra.mxu0 0.0
      %589 = vmatprep.subr.mxu0 0.0
      %590 = vmatpush1.msra.mxu0 0.0
      %591 = vmatprep.subr.mxu0 0.0
      %592 = vmatpush1.msra.mxu0 0.0
      %593 = vmatprep.subr.mxu0 0.0
      %594 = vmatpush1.msra.mxu0 0.0
      %595 = vmatprep.subr.mxu0 0.0
      %596 = vmatpush1.msra.mxu0 0.0
      %597 = vmatprep.subr.mxu0 0.0
      %598 = vmatpush1.msra.mxu0 0.0
      %599 = vmatprep.subr.mxu0 0.0
      %600 = vmatpush1.msra.mxu0 0.0
      %601 = vmatprep.subr.mxu0 0.0
      %602 = vmatpush1.msra.mxu0 0.0
      %603 = vmatprep.subr.mxu0 0.0
      %604 = vmatpush1.msra.mxu0 %v571
      %605 = vmatprep.subr.mxu0 0.0
      %606 = vmatpush2.msra.mxu0 0.0
      %607 = vmatprep.subr.mxu0 0.0
      %608 = vmatpush2.msra.mxu0 0.0
      %609 = vmatprep.subr.mxu0 0.0
      %610 = vmatpush2.msra.mxu0 0.0
      %611 = vmatprep.subr.mxu0 0.0
      %612 = vmatpush2.msra.mxu0 0.0
      %613 = vmatprep.subr.mxu0 0.0
      %614 = vmatpush2.msra.mxu0 0.0
      %615 = vmatprep.subr.mxu0 0.0
      %616 = vmatpush2.msra.mxu0 0.0
      %617 = vmatprep.subr.mxu0 0.0
      %618 = vmatpush2.msra.mxu0 0.0
      %619 = vmatprep.subr.mxu0 0.0
      %620 = vmatpush2.msra.mxu0 0.0
      %621 = vmatprep.subr.mxu0 0.0
      %622 = vmatpush2.msra.mxu0 0.0
      %623 = vmatprep.subr.mxu0 0.0
      %624 = vmatpush2.msra.mxu0 0.0
      %625 = vmatprep.subr.mxu0 0.0
      %626 = vmatpush2.msra.mxu0 0.0
      %627 = vmatprep.subr.mxu0 0.0
      %628 = vmatpush2.msra.mxu0 0.0
      %629 = vmatprep.subr.mxu0 0.0
      %630 = vmatpush2.msra.mxu0 0.0
      %631 = vmatprep.subr.mxu0 0.0
      %632 = vmatpush2.msra.mxu0 0.0
      %633 = vmatprep.subr.mxu0 0.0
      %634 = vmatpush2.msra.mxu0 0.0
      %635 = vmatprep.subr.mxu0 0.0
      %636 = vmatpush2.msra.mxu0 0.0
      %637 = vmatprep.mubr.f32.mxu0 0.0
      %638 = vmatmul.mubr.f32.gmra.mxu0 %v245
      %v639 = vpop.f32.mrf.mxu0
      %v640 = vadd.f32 %v241, %v639
      %v641 = vpop.f32.mrf.mxu0
      %642 = vmatprep.mubr.f32.mxu0 0.0
      %643 = vmatmul.mubr.f32.gmra.mxu0 %v248
      %v644 = vpop.f32.mrf.mxu0
      %v645 = vadd.f32 %v241, %v644
      %v646 = vpop.f32.mrf.mxu0
      %647 = vmatprep.mubr.f32.mxu0 0.0
      %648 = vmatmul.mubr.f32.gmra.mxu0 %v251
      %v649 = vpop.f32.mrf.mxu0
      %v650 = vadd.f32 %v241, %v649
      %v651 = vpop.f32.mrf.mxu0
      %652 = vmatprep.mubr.f32.mxu0 0.0
      %653 = vmatmul.mubr.f32.gmra.mxu0 %v254
      %v654 = vpop.f32.mrf.mxu0
      %v655 = vadd.f32 %v241, %v654
      %v656 = vpop.f32.mrf.mxu0
      %657 = vmatprep.mubr.f32.mxu0 0.0
      %658 = vmatmul.mubr.f32.gmra.mxu0 %v257
      %v659 = vpop.f32.mrf.mxu0
      %v660 = vadd.f32 %v241, %v659
      %v661 = vpop.f32.mrf.mxu0
      %662 = vmatprep.mubr.f32.mxu0 0.0
      %663 = vmatmul.mubr.f32.gmra.mxu0 %v260
      %v664 = vpop.f32.mrf.mxu0
      %v665 = vadd.f32 %v241, %v664
      %v666 = vpop.f32.mrf.mxu0
      %667 = vmatprep.mubr.f32.mxu0 0.0
      %668 = vmatmul.mubr.f32.gmra.mxu0 %v263
      %v669 = vpop.f32.mrf.mxu0
      %v670 = vadd.f32 %v241, %v669
      %v671 = vpop.f32.mrf.mxu0
      %672 = vmatprep.mubr.f32.mxu0 0.0
      %673 = vmatmul.mubr.f32.gmra.mxu0 %v266
      %v674 = vpop.f32.mrf.mxu0
      %v675 = vadd.f32 %v241, %v674
      %v676 = vpop.f32.mrf.mxu0
      %677 = vmatprep.mubr.f32.mxu0 0.0
      %678 = vmatmul.mubr.f32.gmra.mxu0 %v269
      %v679 = vpop.f32.mrf.mxu0
      %v680 = vadd.f32 %v241, %v679
      %v681 = vpop.f32.mrf.mxu0
      %682 = vmatprep.mubr.f32.mxu0 0.0
      %683 = vmatmul.mubr.f32.gmra.mxu0 %v272
      %v684 = vpop.f32.mrf.mxu0
      %v685 = vadd.f32 %v241, %v684
      %v686 = vpop.f32.mrf.mxu0
      %687 = vmatprep.mubr.f32.mxu0 0.0
      %688 = vmatmul.mubr.f32.gmra.mxu0 %v275
      %v689 = vpop.f32.mrf.mxu0
      %v690 = vadd.f32 %v241, %v689
      %v691 = vpop.f32.mrf.mxu0
      %692 = vmatprep.mubr.f32.mxu0 0.0
      %693 = vmatmul.mubr.f32.gmra.mxu0 %v278
      %v694 = vpop.f32.mrf.mxu0
      %v695 = vadd.f32 %v241, %v694
      %v696 = vpop.f32.mrf.mxu0
      %697 = vmatprep.mubr.f32.mxu0 0.0
      %698 = vmatmul.mubr.f32.gmra.mxu0 %v281
      %v699 = vpop.f32.mrf.mxu0
      %v700 = vadd.f32 %v241, %v699
      %v701 = vpop.f32.mrf.mxu0
      %702 = vmatprep.mubr.f32.mxu0 0.0
      %703 = vmatmul.mubr.f32.gmra.mxu0 %v284
      %v704 = vpop.f32.mrf.mxu0
      %v705 = vadd.f32 %v241, %v704
      %v706 = vpop.f32.mrf.mxu0
      %707 = vmatprep.mubr.f32.mxu0 0.0
      %708 = vmatmul.mubr.f32.gmra.mxu0 %v287
      %v709 = vpop.f32.mrf.mxu0
      %v710 = vadd.f32 %v241, %v709
      %v711 = vpop.f32.mrf.mxu0
      %712 = vmatprep.mubr.f32.mxu0 0.0
      %713 = vmatmul.mubr.f32.gmra.mxu0 %v290
      %v714 = vpop.f32.mrf.mxu0
      %v715 = vadd.f32 %v241, %v714
      %v716 = vpop.f32.mrf.mxu0
      %717 = vmatprep.mubr.f32.mxu0 0.0
      %718 = vmatmul.mubr.f32.gmra.mxu0 %v293
      %v719 = vpop.f32.mrf.mxu0
      %v720 = vadd.f32 %v241, %v719
      %v721 = vpop.f32.mrf.mxu0
      %722 = vmatprep.mubr.f32.mxu0 0.0
      %723 = vmatmul.mubr.f32.gmra.mxu0 %v296
      %v724 = vpop.f32.mrf.mxu0
      %v725 = vadd.f32 %v241, %v724
      %v726 = vpop.f32.mrf.mxu0
      %727 = vmatprep.mubr.f32.mxu0 0.0
      %728 = vmatmul.mubr.f32.gmra.mxu0 %v299
      %v729 = vpop.f32.mrf.mxu0
      %v730 = vadd.f32 %v241, %v729
      %v731 = vpop.f32.mrf.mxu0
      %732 = vmatprep.mubr.f32.mxu0 0.0
      %733 = vmatmul.mubr.f32.gmra.mxu0 %v302
      %v734 = vpop.f32.mrf.mxu0
      %v735 = vadd.f32 %v241, %v734
      %v736 = vpop.f32.mrf.mxu0
      %737 = vmatprep.mubr.f32.mxu0 0.0
      %738 = vmatmul.mubr.f32.gmra.mxu0 %v305
      %v739 = vpop.f32.mrf.mxu0
      %v740 = vadd.f32 %v241, %v739
      %v741 = vpop.f32.mrf.mxu0
      %742 = vmatprep.mubr.f32.mxu0 0.0
      %743 = vmatmul.mubr.f32.gmra.mxu0 %v308
      %v744 = vpop.f32.mrf.mxu0
      %v745 = vadd.f32 %v241, %v744
      %v746 = vpop.f32.mrf.mxu0
      %747 = vmatprep.mubr.f32.mxu0 0.0
      %748 = vmatmul.mubr.f32.gmra.mxu0 %v311
      %v749 = vpop.f32.mrf.mxu0
      %v750 = vadd.f32 %v241, %v749
      %v751 = vpop.f32.mrf.mxu0
      %752 = vmatprep.mubr.f32.mxu0 0.0
      %753 = vmatmul.mubr.f32.gmra.mxu0 %v314
      %v754 = vpop.f32.mrf.mxu0
      %v755 = vadd.f32 %v241, %v754
      %v756 = vpop.f32.mrf.mxu0
      %757 = vmatprep.mubr.f32.mxu0 0.0
      %758 = vmatmul.mubr.f32.gmra.mxu0 %v317
      %v759 = vpop.f32.mrf.mxu0
      %v760 = vadd.f32 %v241, %v759
      %v761 = vpop.f32.mrf.mxu0
      %762 = vmatprep.mubr.f32.mxu0 0.0
      %763 = vmatmul.mubr.f32.gmra.mxu0 %v320
      %v764 = vpop.f32.mrf.mxu0
      %v765 = vadd.f32 %v241, %v764
      %v766 = vpop.f32.mrf.mxu0
      %767 = vmatprep.mubr.f32.mxu0 0.0
      %768 = vmatmul.mubr.f32.gmra.mxu0 %v323
      %v769 = vpop.f32.mrf.mxu0
      %v770 = vadd.f32 %v241, %v769
      %v771 = vpop.f32.mrf.mxu0
      %772 = vmatprep.mubr.f32.mxu0 0.0
      %773 = vmatmul.mubr.f32.gmra.mxu0 %v326
      %v774 = vpop.f32.mrf.mxu0
      %v775 = vadd.f32 %v241, %v774
      %v776 = vpop.f32.mrf.mxu0
      %777 = vmatprep.mubr.f32.mxu0 0.0
      %778 = vmatmul.mubr.f32.gmra.mxu0 %v329
      %v779 = vpop.f32.mrf.mxu0
      %v780 = vadd.f32 %v241, %v779
      %v781 = vpop.f32.mrf.mxu0
      %782 = vmatprep.mubr.f32.mxu0 0.0
      %783 = vmatmul.mubr.f32.gmra.mxu0 %v332
      %v784 = vpop.f32.mrf.mxu0
      %v785 = vadd.f32 %v241, %v784
      %v786 = vpop.f32.mrf.mxu0
      %787 = vmatprep.mubr.f32.mxu0 0.0
      %788 = vmatmul.mubr.f32.gmra.mxu0 %v335
      %v789 = vpop.f32.mrf.mxu0
      %v790 = vadd.f32 %v241, %v789
      %v791 = vpop.f32.mrf.mxu0
      %792 = vmatprep.mubr.f32.mxu0 0.0
      %793 = vmatmul.mubr.f32.gmra.mxu0 %v338
      %v794 = vpop.f32.mrf.mxu0
      %v795 = vadd.f32 %v241, %v794
      %v796 = vpop.f32.mrf.mxu0
      %797 = vdwg.mxu0
      %vm798 = vcmask 130048
      %799 = vst.msk [vmem:[%s201] sm:$0xff] %vm798, %v411
      %800 = vst.msk [vmem:[%s201 + $0x8] sm:$0xff] %vm798, %v416
      %801 = vst.msk [vmem:[%s201 + $0x20] sm:$0xff] %vm798, %v421
      %802 = vst.msk [vmem:[%s201 + $0x28] sm:$0xff] %vm798, %v426
      %803 = vst.msk [vmem:[%s201 + $0x40] sm:$0xff] %vm798, %v431
      %804 = vst.msk [vmem:[%s201 + $0x48] sm:$0xff] %vm798, %v436
      %805 = vst.msk [vmem:[%s201 + $0x60] sm:$0xff] %vm798, %v441
      %806 = vst.msk [vmem:[%s201 + $0x68] sm:$0xff] %vm798, %v446
      %807 = vst.msk [vmem:[%s201 + $0x80] sm:$0xff] %vm798, %v451
      %808 = vst.msk [vmem:[%s201 + $0x88] sm:$0xff] %vm798, %v456
      %809 = vst.msk [vmem:[%s201 + $0xa0] sm:$0xff] %vm798, %v461
      %810 = vst.msk [vmem:[%s201 + $0xa8] sm:$0xff] %vm798, %v466
      %811 = vst.msk [vmem:[%s201 + $0xc0] sm:$0xff] %vm798, %v471
      %812 = vst.msk [vmem:[%s201 + $0xc8] sm:$0xff] %vm798, %v476
      %813 = vst.msk [vmem:[%s201 + $0xe0] sm:$0xff] %vm798, %v481
      %814 = vst.msk [vmem:[%s201 + $0xe8] sm:$0xff] %vm798, %v486
      %815 = vst.msk [vmem:[%s201 + $0x100] sm:$0xff] %vm798, %v491
      %816 = vst.msk [vmem:[%s201 + $0x108] sm:$0xff] %vm798, %v496
      %817 = vst.msk [vmem:[%s201 + $0x120] sm:$0xff] %vm798, %v501
      %818 = vst.msk [vmem:[%s201 + $0x128] sm:$0xff] %vm798, %v506
      %819 = vst.msk [vmem:[%s201 + $0x140] sm:$0xff] %vm798, %v511
      %820 = vst.msk [vmem:[%s201 + $0x148] sm:$0xff] %vm798, %v516
      %821 = vst.msk [vmem:[%s201 + $0x160] sm:$0xff] %vm798, %v521
      %822 = vst.msk [vmem:[%s201 + $0x168] sm:$0xff] %vm798, %v526
      %823 = vst.msk [vmem:[%s201 + $0x180] sm:$0xff] %vm798, %v531
      %824 = vst.msk [vmem:[%s201 + $0x188] sm:$0xff] %vm798, %v536
      %825 = vst.msk [vmem:[%s201 + $0x1a0] sm:$0xff] %vm798, %v541
      %826 = vst.msk [vmem:[%s201 + $0x1a8] sm:$0xff] %vm798, %v546
      %827 = vst.msk [vmem:[%s201 + $0x1c0] sm:$0xff] %vm798, %v551
      %828 = vst.msk [vmem:[%s201 + $0x1c8] sm:$0xff] %vm798, %v556
      %829 = vst.msk [vmem:[%s201 + $0x1e0] sm:$0xff] %vm798, %v561
      %830 = vst.msk [vmem:[%s201 + $0x1e8] sm:$0xff] %vm798, %v566
      %s831 = scalar_lea.vmem %s201, 16
      %832 = vst.msk [vmem:[%s831] sm:$0xff] %vm798, %v640
      %833 = vst.msk [vmem:[%s831 + $0x8] sm:$0xff] %vm798, %v645
      %834 = vst.msk [vmem:[%s831 + $0x20] sm:$0xff] %vm798, %v650
      %835 = vst.msk [vmem:[%s831 + $0x28] sm:$0xff] %vm798, %v655
      %836 = vst.msk [vmem:[%s831 + $0x40] sm:$0xff] %vm798, %v660
      %837 = vst.msk [vmem:[%s831 + $0x48] sm:$0xff] %vm798, %v665
      %838 = vst.msk [vmem:[%s831 + $0x60] sm:$0xff] %vm798, %v670
      %839 = vst.msk [vmem:[%s831 + $0x68] sm:$0xff] %vm798, %v675
      %840 = vst.msk [vmem:[%s831 + $0x80] sm:$0xff] %vm798, %v680
      %841 = vst.msk [vmem:[%s831 + $0x88] sm:$0xff] %vm798, %v685
      %842 = vst.msk [vmem:[%s831 + $0xa0] sm:$0xff] %vm798, %v690
      %843 = vst.msk [vmem:[%s831 + $0xa8] sm:$0xff] %vm798, %v695
      %844 = vst.msk [vmem:[%s831 + $0xc0] sm:$0xff] %vm798, %v700
      %845 = vst.msk [vmem:[%s831 + $0xc8] sm:$0xff] %vm798, %v705
      %846 = vst.msk [vmem:[%s831 + $0xe0] sm:$0xff] %vm798, %v710
      %847 = vst.msk [vmem:[%s831 + $0xe8] sm:$0xff] %vm798, %v715
      %848 = vst.msk [vmem:[%s831 + $0x100] sm:$0xff] %vm798, %v720
      %849 = vst.msk [vmem:[%s831 + $0x108] sm:$0xff] %vm798, %v725
      %850 = vst.msk [vmem:[%s831 + $0x120] sm:$0xff] %vm798, %v730
      %851 = vst.msk [vmem:[%s831 + $0x128] sm:$0xff] %vm798, %v735
      %852 = vst.msk [vmem:[%s831 + $0x140] sm:$0xff] %vm798, %v740
      %853 = vst.msk [vmem:[%s831 + $0x148] sm:$0xff] %vm798, %v745
      %854 = vst.msk [vmem:[%s831 + $0x160] sm:$0xff] %vm798, %v750
      %855 = vst.msk [vmem:[%s831 + $0x168] sm:$0xff] %vm798, %v755
      %856 = vst.msk [vmem:[%s831 + $0x180] sm:$0xff] %vm798, %v760
      %857 = vst.msk [vmem:[%s831 + $0x188] sm:$0xff] %vm798, %v765
      %858 = vst.msk [vmem:[%s831 + $0x1a0] sm:$0xff] %vm798, %v770
      %859 = vst.msk [vmem:[%s831 + $0x1a8] sm:$0xff] %vm798, %v775
      %860 = vst.msk [vmem:[%s831 + $0x1c0] sm:$0xff] %vm798, %v780
      %861 = vst.msk [vmem:[%s831 + $0x1c8] sm:$0xff] %vm798, %v785
      %862 = vst.msk [vmem:[%s831 + $0x1e0] sm:$0xff] %vm798, %v790
      %863 = vst.msk [vmem:[%s831 + $0x1e8] sm:$0xff] %vm798, %v795
      %s864 = smul.u32 16, %s15
      %p865 = scmp.lt.s32.totalorder %s864, 31
      %s866 = scalar_select %p865, %s864, 31
      %s867 = smul.addr %s866, 4
      %s868 = smul.addr %s867, 8
      %s869 = scalar_lea.vmem %s4, %s868
      // Predicated region
      $region37: #{up_conv_forward.1} parent=35 // pred_check
        %p870 = pneg %p122
      $region38: #{up_conv_forward.1} parent=35 // pred_check_branch
        %872 = sbr.rel (%p870) target = $region40
      $region39: #{up_conv_forward.1} parent=35 // pred_region
        %s873 = smul.u32 16, %s15
      $region40: #{up_conv_forward.1} parent=35 // pred_fallthru
        _
    $region36: #{up_conv_forward.1} parent=5 // pred_fallthru
      _
    %p874 = scmp.le.s32.totalorder 2, %s10
    // Predicated region
    $region41: #{up_conv_forward.1} parent=5 // pred_check
      %p875 = pneg %p874
    $region42: #{up_conv_forward.1} parent=5 // pred_check_branch
      %877 = sbr.rel (%p875) target = $region44
    $region43: #{up_conv_forward.1} parent=5 // pred_region
      %s878 = ssub.s32 %s10, 2
      // Predicated region
      $region45: #{up_conv_forward.1} parent=43 // pred_check
        %p879 = pneg %p128
      $region46: #{up_conv_forward.1} parent=43 // pred_check_branch
        %881 = sbr.rel (%p879) target = $region48
      $region47: #{up_conv_forward.1} parent=43 // pred_region
        %s882 = smul.u32 16, %s16
        %p883 = scmp.lt.s32.totalorder %s882, 31
        %s884 = scalar_select %p883, %s882, 31
        %s885 = smul.addr %s884, 4
        %s886 = smul.addr %s885, 8
        %s887 = scalar_lea.vmem %s4, %s886
      $region48: #{up_conv_forward.1} parent=43 // pred_fallthru
        _
    $region44: #{up_conv_forward.1} parent=5 // pred_fallthru
      _
  $region6: #{up_conv_forward.1} parent=0 // loop_footer
    %s14 = sadd.s32 1, %s10
  $region7: #{up_conv_forward.1} parent=0 // loop_footer_branch
    %9 = sbr.rel target = $region3
  $region8: #{up_conv_forward.1} parent=0 // loop_exit
    _

</llo_original>
